<compile_context>
chip_gen: v7x
topology: tpu7x:2x2x1
jax: 0.10.0
libtpu: 0.0.40
codegen_flags: <defaults>
</compile_context>

<pallas_src>
import jax
import jax.numpy as jnp
from jax.experimental import pallas as pl
from jax.experimental.pallas import tpu as pltpu


def gaussian_curve_kernel(times_ref, params_ref, out_ref):
    # times_ref : (Bb, Tt)       lane-dense, batches packed on sublanes
    # params_ref: (Bb, 3 + M)    columns = [t0, lambda, f0, fm_0..fm_{M-1}]
    # out_ref   : (Bb, M, Tt)    lane-dense output block
    t = times_ref[...]                                 # (Bb, Tt)
    p = params_ref[...]                                # (Bb, 3+M)

    t0 = p[:, 0:1]                                     # (Bb, 1)
    lam = jnp.maximum(p[:, 1:2], 0.0)                  # clamp(lambda, min=0)
    f0 = p[:, 2:3]                                     # (Bb, 1)
    fm = p[:, 3:]                                      # (Bb, M)

    # exp computed once per (batch, time) sample on packed vregs (EUP slot),
    # then broadcast across the M bands (sublane axis of the output block).
    z = jnp.exp(-((t - t0) ** 2) * lam)                # (Bb, Tt)
    y = fm[:, :, None] * z[:, None, :] + f0[:, :, None]   # (Bb, M, Tt)
    out_ref[...] = y.astype(out_ref.dtype)


def _round_up(x, m):
    return pl.cdiv(x, m) * m


def gaussian_curve_forward(times, t0, lam, f0, fm, out_dtype=jnp.float32):
    """times: (B, T); t0/lam/f0: (B,); fm: (B, M).  Returns (B, T, M)."""
    B, T = times.shape
    M = fm.shape[1]
    P = 3 + M

    times = times.astype(jnp.float32)
    # Pack per-batch scalars into one small (B, P) array -> a single tiny DMA per step.
    params = jnp.concatenate(
        [t0.reshape(B, 1), lam.reshape(B, 1), f0.reshape(B, 1), fm.reshape(B, M)],
        axis=1,
    ).astype(jnp.float32)

    # ---- T tiling (lane axis): bounded lane-dense tiles. ----
    if T <= 2048:
        Tt, T_pad = T, T                  # single block; block == full dim is always legal
    else:
        Tt = 1024
        T_pad = _round_up(T, Tt)
    Tt_lanes = _round_up(Tt, 128)         # lane-padded width actually resident in VMEM

    # ---- B tiling: PADDED VMEM bytes per batch row per buffer (f32). ----
    #   times  (Bb, Tt)    ->     Tt_lanes * 4   (Bb itself rounds up to 8 sublanes)
    #   params (Bb, P)     ->     128      * 4
    #   out    (Bb, M, Tt) -> 8 * Tt_lanes * 4   (M = 6 pads to 8 sublanes)
    per_batch = 4 * (Tt_lanes + 128 + 8 * Tt_lanes)
    budget = 16 * 1024 * 1024             # double-buffered working-set target (v7x-safe)
    max_bb = max(1, budget // (2 * per_batch))

    Bb = min(B, max_bb)
    if B > 8:
        # Keep >= 2 batch blocks so the "parallel" B axis can shard over v7x's 2 TCs.
        Bb = min(Bb, max(8, B // 2))
    if Bb < B:
        Bb = max(8, (Bb // 8) * 8)        # sublane-aligned partial-batch blocks (8,128 rule)
        B_pad = _round_up(B, Bb)
    else:
        B_pad = B

    if T_pad != T:
        times = jnp.pad(times, ((0, 0), (0, T_pad - T)))
    if B_pad != B:
        times = jnp.pad(times, ((0, B_pad - B), (0, 0)))
        params = jnp.pad(params, ((0, B_pad - B), (0, 0)))

    grid = (B_pad // Bb, T_pad // Tt)

    cost = pl.CostEstimate(
        flops=B * T * (4 + 2 * M),
        transcendentals=B * T,
        bytes_accessed=4 * (B * T + B * P + B * T * M),
    )

    out = pl.pallas_call(
        gaussian_curve_kernel,
        out_shape=jax.ShapeDtypeStruct((B_pad, M, T_pad), out_dtype),
        grid=grid,
        in_specs=[
            pl.BlockSpec((Bb, Tt), lambda b, t: (b, t)),
            pl.BlockSpec((Bb, P), lambda b, t: (b, 0)),
        ],
        out_specs=pl.BlockSpec((Bb, M, Tt), lambda b, t: (b, 0, t)),
        compiler_params=pltpu.CompilerParams(
            dimension_semantics=("parallel", "parallel"),
            vmem_limit_bytes=32 * 1024 * 1024,
        ),
        cost_estimate=cost,
    )(times, params)

    # Kernel emits lane-dense (B, M, T); one XLA transpose restores the PyTorch
    # (B, T, M) contract (consumers that accept (B, M, T) can skip the transpose).
    out = out[:B, :, :T]
    return jnp.transpose(out, (0, 2, 1))
    # TODO(synk): `masks` boolean indexing (y[masks]) has a data-dependent output
    # shape with no clean Pallas equivalent; only the masks=None path is implemented.


def _reference_forward(times, t0, lam, f0, fm):
    z = jnp.exp(-((times - t0[:, None]) ** 2) * jnp.maximum(lam[:, None], 0.0))
    return fm[:, None, :] * z[:, :, None] + f0[:, None, None]


if __name__ == "__main__":
    batch_size = 8
    n_bands = 6
    seq = 16

    # Deterministic parameter init matching GaussianCurve.__init__:
    f0 = jnp.zeros((batch_size,), dtype=jnp.float32)          # zeros
    lam = jnp.ones((batch_size,), dtype=jnp.float32) * 10.0   # ones * 10
    t0 = jnp.ones((batch_size,), dtype=jnp.float32) * 0.5     # ones * 0.5
    fm = jnp.ones((batch_size, n_bands), dtype=jnp.float32)   # ones

    key = jax.random.PRNGKey(0)
    times = jax.random.uniform(key, (batch_size, seq), dtype=jnp.float32)

    y = gaussian_curve_forward(times, t0, lam, f0, fm)
    y = jax.block_until_ready(y)

    y_ref = _reference_forward(times, t0, lam, f0, fm)
    assert y.shape == (batch_size, seq, n_bands)
    assert jnp.allclose(y, y_ref, atol=1e-5, rtol=1e-5)

    print("KERNEL_OK")
</pallas_src>

<mosaic_0001>
module attributes {stable_mosaic.version = 11 : i64} {
  func.func @gaussian_curve_kernel(%arg0: i32, %arg1: i32, %arg2: memref<8x16xf32, #tpu.memory_space<vmem>>, %arg3: memref<8x9xf32, #tpu.memory_space<vmem>>, %arg4: memref<8x6x16xf32, #tpu.memory_space<vmem>>) attributes {dimension_semantics = [#tpu.dimension_semantics<parallel>, #tpu.dimension_semantics<parallel>], iteration_bounds = array<i64: 1, 1>, scalar_prefetch = 0 : i64, scratch_operands = 0 : i64, tpu.core_type = #tpu.core_type<tc>, window_params = [{transform_indices = @transform_0, window_bounds = array<i64: 8, 16>}, {transform_indices = @transform_1, window_bounds = array<i64: 8, 9>}, {transform_indices = @transform_2, window_bounds = array<i64: 8, 6, 16>}]} {
    %c0 = arith.constant 0 : index
    %c0_0 = arith.constant 0 : index
    %0 = vector.load %arg2[%c0, %c0_0] : memref<8x16xf32, #tpu.memory_space<vmem>>, vector<8x16xf32>
    %c0_1 = arith.constant 0 : index
    %c0_2 = arith.constant 0 : index
    %1 = vector.load %arg3[%c0_1, %c0_2] : memref<8x9xf32, #tpu.memory_space<vmem>>, vector<8x9xf32>
    %2 = vector.extract_strided_slice %1 {offsets = [0, 0], sizes = [8, 1], strides = [1, 1]} : vector<8x9xf32> to vector<8x1xf32>
    %3 = vector.extract_strided_slice %1 {offsets = [0, 1], sizes = [8, 1], strides = [1, 1]} : vector<8x9xf32> to vector<8x1xf32>
    %cst = arith.constant 0.000000e+00 : f32
    %4 = vector.broadcast %cst : f32 to vector<8x1xf32>
    %5 = arith.maximumf %3, %4 : vector<8x1xf32>
    %6 = vector.extract_strided_slice %1 {offsets = [0, 2], sizes = [8, 1], strides = [1, 1]} : vector<8x9xf32> to vector<8x1xf32>
    %7 = vector.extract_strided_slice %1 {offsets = [0, 3], sizes = [8, 6], strides = [1, 1]} : vector<8x9xf32> to vector<8x6xf32>
    %8 = vector.broadcast %2 : vector<8x1xf32> to vector<8x16xf32>
    %9 = arith.subf %0, %8 : vector<8x16xf32>
    %10 = arith.mulf %9, %9 : vector<8x16xf32>
    %cst_3 = arith.constant 0.000000e+00 : f32
    %11 = vector.broadcast %cst_3 : f32 to vector<8x16xf32>
    %12 = arith.subf %11, %10 : vector<8x16xf32>
    %13 = vector.broadcast %5 : vector<8x1xf32> to vector<8x16xf32>
    %14 = arith.mulf %12, %13 : vector<8x16xf32>
    %15 = math.exp %14 : vector<8x16xf32>
    %16 = vector.shape_cast %7 : vector<8x6xf32> to vector<8x6x1xf32>
    %17 = vector.shape_cast %15 : vector<8x16xf32> to vector<8x1x16xf32>
    %18 = vector.broadcast %16 : vector<8x6x1xf32> to vector<8x6x16xf32>
    %19 = vector.broadcast %17 : vector<8x1x16xf32> to vector<8x6x16xf32>
    %20 = arith.mulf %18, %19 : vector<8x6x16xf32>
    %21 = vector.shape_cast %6 : vector<8x1xf32> to vector<8x1x1xf32>
    %22 = vector.broadcast %21 : vector<8x1x1xf32> to vector<8x6x16xf32>
    %23 = arith.addf %20, %22 : vector<8x6x16xf32>
    %c0_4 = arith.constant 0 : index
    %c0_5 = arith.constant 0 : index
    %c0_6 = arith.constant 0 : index
    %24 = vector.load %arg4[%c0_4, %c0_5, %c0_6] : memref<8x6x16xf32, #tpu.memory_space<vmem>>, vector<8x6x16xf32>
    tpu.vector_store %arg4[%c0_4, %c0_5, %c0_6], %23 {strides = array<i32>} : memref<8x6x16xf32, #tpu.memory_space<vmem>>, vector<8x6x16xf32>,
    return
  }
  func.func @transform_0(%arg0: i32, %arg1: i32) -> (i32, i32) {
    %c0_i32 = arith.constant 0 : i32
    return %arg0, %arg1 : i32, i32
  }
  func.func @transform_1(%arg0: i32, %arg1: i32) -> (i32, i32) {
    %c0_i32 = arith.constant 0 : i32
    %c0_i32_0 = arith.constant 0 : i32
    return %arg0, %c0_i32 : i32, i32
  }
  func.func @transform_2(%arg0: i32, %arg1: i32) -> (i32, i32, i32) {
    %c0_i32 = arith.constant 0 : i32
    %c0_i32_0 = arith.constant 0 : i32
    return %arg0, %c0_i32, %arg1 : i32, i32, i32
  }
}

</mosaic_0001>

<llo_original>
// kernel: tpu_custom_call.1
$region0: #{tpu_custom_call.1}
  #allocation0 [shape = 'u32[]', space=smem, size = 0x4, offset = 0x4, fixed_abs, tag = 'smem constant byte address 0x4 - core index']
  #allocation1 [shape = 'u32[144,128]{1,0:T(1,128)}', space=vmem, size = 0x12000, scoped, tag = 'internal scratch']
  %s0 = inlined_call_operand.hbm [shape: f32[8,16], index: 0, kind: input, shape index: {}]
  %s1 = inlined_call_operand.hbm [shape: f32[8,9], index: 1, kind: input, shape index: {}]
  %s2 = inlined_call_operand.vmem [shape: f32[8,6,16], index: 2, kind: output, shape index: {}]
  %s3 = sld [smem:[#allocation0]]
  $region26: #{tpu_custom_call.1} parent=0
    _
  %s5 = ssub.s32 1, %s3
  %s6 = scalar_select 0, %s5, %s3
  $region1: #{tpu_custom_call.1} parent=0
    #allocation2 [shape = 'u8[4096]{0}', space=vmem, size = 0x1000, scoped, tag = 'input window, operand 0, single buffered']
    #allocation3 [shape = 's32[1]{0}', space=sflag, size = 0x4, scoped, tag = 'scoped memory for tpu_custom_call.1']
    #allocation4 [shape = 'u8[4096]{0}', space=vmem, size = 0x1000, scoped, tag = 'input window, operand 1, single buffered']
    #allocation5 [shape = 's32[1]{0}', space=sflag, size = 0x4, scoped, tag = 'scoped memory for tpu_custom_call.1']
    %7 = vsyncpa [#allocation3], 0
    %8 = vsyncpa [#allocation5], 0
    // Predicated region
    $region2: #{tpu_custom_call.1} parent=1 // pred_check
      _
    $region3: #{tpu_custom_call.1} parent=1 // pred_check_branch
      %10 = sbr.rel (0) target = $region5
    $region4: #{tpu_custom_call.1} parent=1 // pred_region
      %s12 = ssub.s32 128, 128
      %13 = vsyncadd [#allocation3], %s12
      %s15 = sshll.u32 [#allocation2], 4
      %s16 = int_to_ptr.vmem [resolvable:$true] %s15
      %18 = dma.hbm_to_vmem [thread:$0]  %s0, 128, %s16, [#allocation3]
    $region5: #{tpu_custom_call.1} parent=1 // pred_fallthru
      _
    // Predicated region
    $region6: #{tpu_custom_call.1} parent=1 // pred_check
      _
    $region7: #{tpu_custom_call.1} parent=1 // pred_check_branch
      %20 = sbr.rel (0) target = $region9
    $region8: #{tpu_custom_call.1} parent=1 // pred_region
      %s22 = ssub.s32 128, 128
      %23 = vsyncadd [#allocation5], %s22
      %s25 = sshll.u32 [#allocation4], 4
      %s26 = int_to_ptr.vmem [resolvable:$true] %s25
      %28 = dma.hbm_to_vmem [thread:$0]  %s1, 128, %s26, [#allocation5]
    $region9: #{tpu_custom_call.1} parent=1 // pred_fallthru
      _
    // Predicated region
    $region10: #{tpu_custom_call.1} parent=1 // pred_check
      _
    $region11: #{tpu_custom_call.1} parent=1 // pred_check_branch
      %30 = sbr.rel (0) target = $region13
    $region12: #{tpu_custom_call.1} parent=1 // pred_region
      %31 = dma.done [#allocation3], 128
    $region13: #{tpu_custom_call.1} parent=1 // pred_fallthru
      _
    // Predicated region
    $region14: #{tpu_custom_call.1} parent=1 // pred_check
      _
    $region15: #{tpu_custom_call.1} parent=1 // pred_check_branch
      %33 = sbr.rel (0) target = $region17
    $region16: #{tpu_custom_call.1} parent=1 // pred_region
      %34 = dma.done [#allocation5], 128
    $region17: #{tpu_custom_call.1} parent=1 // pred_fallthru
      _
    %v35 = vld [vmem:[#allocation2] sm:$0xff]
    %v36 = vld [vmem:[#allocation4] sm:$0xff]
    %v37 = vmax.f32 %v36, 0.0
    %39 = vset.pattern.permute.xlu0 0
    %40 = vperm.xlu0 %39, %v36
    %v41 = vpop.permute.xlu0 %40
    %v43 = vsub.f32 %v35, %v41
    %v44 = vmul.f32 %v43, %v43
    %v45 = vsub.f32 0.0, %v44
    %47 = vset.pattern.permute.xlu0 1
    %48 = vperm.xlu0 %47, %v37
    %v49 = vpop.permute.xlu0 %48
    %v51 = vmul.f32 %v45, %v49
    %v52 = vmul.f32 %v51, 1.442695
    %v53 = vpow.pop %v52
    %v54 = vlaneseq
    %v55 = vshrl.u32 %v54, 7
    %v56 = vsub.s32 0, %v55
    %v57 = vrot.slane %v36, %v56
    %s59 = sor.u32 256, 3
    %60 = vbcast.lane.b32.xlu0 %v57, %s59
    %v61 = vpop.permute.xlu0 %60
    %v62 = vlaneseq
    %v63 = vshrl.u32 %v62, 7
    %v64 = vsub.s32 1, %v63
    %v65 = vrot.slane %v36, %v64
    %s67 = sor.u32 256, 3
    %68 = vbcast.lane.b32.xlu0 %v65, %s67
    %v69 = vpop.permute.xlu0 %68
    %v70 = vlaneseq
    %v71 = vshrl.u32 %v70, 7
    %v72 = vsub.s32 2, %v71
    %v73 = vrot.slane %v36, %v72
    %s75 = sor.u32 256, 3
    %76 = vbcast.lane.b32.xlu0 %v73, %s75
    %v77 = vpop.permute.xlu0 %76
    %v78 = vlaneseq
    %v79 = vshrl.u32 %v78, 7
    %v80 = vsub.s32 3, %v79
    %v81 = vrot.slane %v36, %v80
    %s83 = sor.u32 256, 3
    %84 = vbcast.lane.b32.xlu0 %v81, %s83
    %v85 = vpop.permute.xlu0 %84
    %v86 = vlaneseq
    %v87 = vshrl.u32 %v86, 7
    %v88 = vsub.s32 4, %v87
    %v89 = vrot.slane %v36, %v88
    %s91 = sor.u32 256, 3
    %92 = vbcast.lane.b32.xlu0 %v89, %s91
    %v93 = vpop.permute.xlu0 %92
    %v94 = vlaneseq
    %v95 = vshrl.u32 %v94, 7
    %v96 = vsub.s32 5, %v95
    %v97 = vrot.slane %v36, %v96
    %s99 = sor.u32 256, 3
    %100 = vbcast.lane.b32.xlu0 %v97, %s99
    %v101 = vpop.permute.xlu0 %100
    %v102 = vlaneseq
    %v103 = vshrl.u32 %v102, 7
    %v104 = vsub.s32 6, %v103
    %v105 = vrot.slane %v36, %v104
    %s107 = sor.u32 256, 3
    %108 = vbcast.lane.b32.xlu0 %v105, %s107
    %v109 = vpop.permute.xlu0 %108
    %v110 = vlaneseq
    %v111 = vshrl.u32 %v110, 7
    %v112 = vsub.s32 7, %v111
    %v113 = vrot.slane %v36, %v112
    %s115 = sor.u32 256, 3
    %116 = vbcast.lane.b32.xlu0 %v113, %s115
    %v117 = vpop.permute.xlu0 %116
    %v119 = vcombine.high %v53, %v53
    %v121 = vunpack.c.l.s4 1966171168
    %v122 = vunpack.c.0.s8 %v121
    %v123 = vlaneseq
    %v124 = vshrl.u32 %v123, 7
    %v125 = vsub.s32 %v122, %v124
    %v126 = vrot.slane %v53, %v125
    %v128 = vunpack.c.l.s4 1966171168
    %v129 = vunpack.c.0.s8 %v128
    %v130 = vlaneseq
    %v131 = vshrl.u32 %v130, 7
    %v132 = vsub.s32 %v129, %v131
    %v133 = vrot.slane %v119, %v132
    %v134 = vcombine.high %v126, %v126
    %v135 = vcombine.high %v133, %v133
    %v137 = vunpack.c.l.s4 1966171168
    %v138 = vunpack.c.0.s8 %v137
    %v139 = vlaneseq
    %v140 = vshrl.u32 %v139, 7
    %v141 = vsub.s32 %v138, %v140
    %v142 = vrot.slane %v126, %v141
    %v144 = vunpack.c.l.s4 1966171168
    %v145 = vunpack.c.0.s8 %v144
    %v146 = vlaneseq
    %v147 = vshrl.u32 %v146, 7
    %v148 = vsub.s32 %v145, %v147
    %v149 = vrot.slane %v133, %v148
    %v151 = vunpack.c.l.s4 1966171168
    %v152 = vunpack.c.0.s8 %v151
    %v153 = vlaneseq
    %v154 = vshrl.u32 %v153, 7
    %v155 = vsub.s32 %v152, %v154
    %v156 = vrot.slane %v134, %v155
    %v158 = vunpack.c.l.s4 1966171168
    %v159 = vunpack.c.0.s8 %v158
    %v160 = vlaneseq
    %v161 = vshrl.u32 %v160, 7
    %v162 = vsub.s32 %v159, %v161
    %v163 = vrot.slane %v135, %v162
    %v164 = vcombine.high %v142, %v142
    %v165 = vcombine.high %v149, %v149
    %v166 = vcombine.high %v156, %v156
    %v167 = vcombine.high %v163, %v163
    %v168 = vlaneseq
    %v169 = vshrl.u32 %v168, 7
    %v170 = vsub.s32 0, %v169
    %v171 = vrot.slane %v142, %v170
    %v172 = vlaneseq
    %v173 = vshrl.u32 %v172, 7
    %v174 = vsub.s32 0, %v173
    %v175 = vrot.slane %v156, %v174
    %v176 = vlaneseq
    %v177 = vshrl.u32 %v176, 7
    %v178 = vsub.s32 0, %v177
    %v179 = vrot.slane %v164, %v178
    %v180 = vlaneseq
    %v181 = vshrl.u32 %v180, 7
    %v182 = vsub.s32 0, %v181
    %v183 = vrot.slane %v166, %v182
    %v184 = vlaneseq
    %v185 = vshrl.u32 %v184, 7
    %v186 = vsub.s32 0, %v185
    %v187 = vrot.slane %v149, %v186
    %v188 = vlaneseq
    %v189 = vshrl.u32 %v188, 7
    %v190 = vsub.s32 0, %v189
    %v191 = vrot.slane %v163, %v190
    %v192 = vlaneseq
    %v193 = vshrl.u32 %v192, 7
    %v194 = vsub.s32 0, %v193
    %v195 = vrot.slane %v165, %v194
    %v196 = vlaneseq
    %v197 = vshrl.u32 %v196, 7
    %v198 = vsub.s32 0, %v197
    %v199 = vrot.slane %v167, %v198
    %v208 = vmul.f32 %v61, %v171
    %v209 = vmul.f32 %v69, %v175
    %v210 = vmul.f32 %v77, %v179
    %v211 = vmul.f32 %v85, %v183
    %v212 = vmul.f32 %v93, %v187
    %v213 = vmul.f32 %v101, %v191
    %v214 = vmul.f32 %v109, %v195
    %v215 = vmul.f32 %v117, %v199
    %v216 = vcombine.high %v36, %v36
    %v218 = vunpack.c.l.s4 1966171168
    %v219 = vunpack.c.0.s8 %v218
    %v220 = vlaneseq
    %v221 = vshrl.u32 %v220, 7
    %v222 = vsub.s32 %v219, %v221
    %v223 = vrot.slane %v36, %v222
    %v225 = vunpack.c.l.s4 1966171168
    %v226 = vunpack.c.0.s8 %v225
    %v227 = vlaneseq
    %v228 = vshrl.u32 %v227, 7
    %v229 = vsub.s32 %v226, %v228
    %v230 = vrot.slane %v216, %v229
    %v231 = vcombine.high %v223, %v223
    %v232 = vcombine.high %v230, %v230
    %v234 = vunpack.c.l.s4 1966171168
    %v235 = vunpack.c.0.s8 %v234
    %v236 = vlaneseq
    %v237 = vshrl.u32 %v236, 7
    %v238 = vsub.s32 %v235, %v237
    %v239 = vrot.slane %v223, %v238
    %v241 = vunpack.c.l.s4 1966171168
    %v242 = vunpack.c.0.s8 %v241
    %v243 = vlaneseq
    %v244 = vshrl.u32 %v243, 7
    %v245 = vsub.s32 %v242, %v244
    %v246 = vrot.slane %v230, %v245
    %v248 = vunpack.c.l.s4 1966171168
    %v249 = vunpack.c.0.s8 %v248
    %v250 = vlaneseq
    %v251 = vshrl.u32 %v250, 7
    %v252 = vsub.s32 %v249, %v251
    %v253 = vrot.slane %v231, %v252
    %v255 = vunpack.c.l.s4 1966171168
    %v256 = vunpack.c.0.s8 %v255
    %v257 = vlaneseq
    %v258 = vshrl.u32 %v257, 7
    %v259 = vsub.s32 %v256, %v258
    %v260 = vrot.slane %v232, %v259
    %v261 = vcombine.high %v239, %v239
    %v262 = vcombine.high %v246, %v246
    %v263 = vcombine.high %v253, %v253
    %v264 = vcombine.high %v260, %v260
    %v265 = vlaneseq
    %v266 = vshrl.u32 %v265, 7
    %v267 = vsub.s32 0, %v266
    %v268 = vrot.slane %v239, %v267
    %v269 = vlaneseq
    %v270 = vshrl.u32 %v269, 7
    %v271 = vsub.s32 0, %v270
    %v272 = vrot.slane %v253, %v271
    %v273 = vlaneseq
    %v274 = vshrl.u32 %v273, 7
    %v275 = vsub.s32 0, %v274
    %v276 = vrot.slane %v261, %v275
    %v277 = vlaneseq
    %v278 = vshrl.u32 %v277, 7
    %v279 = vsub.s32 0, %v278
    %v280 = vrot.slane %v263, %v279
    %v281 = vlaneseq
    %v282 = vshrl.u32 %v281, 7
    %v283 = vsub.s32 0, %v282
    %v284 = vrot.slane %v246, %v283
    %v285 = vlaneseq
    %v286 = vshrl.u32 %v285, 7
    %v287 = vsub.s32 0, %v286
    %v288 = vrot.slane %v260, %v287
    %v289 = vlaneseq
    %v290 = vshrl.u32 %v289, 7
    %v291 = vsub.s32 0, %v290
    %v292 = vrot.slane %v262, %v291
    %v293 = vlaneseq
    %v294 = vshrl.u32 %v293, 7
    %v295 = vsub.s32 0, %v294
    %v296 = vrot.slane %v264, %v295
    %297 = vset.pattern.permute.xlu0 2
    %298 = vperm.xlu0 %297, %v268
    %v299 = vpop.permute.xlu0 %298
    %301 = vset.pattern.permute.xlu0 2
    %302 = vperm.xlu0 %301, %v272
    %v303 = vpop.permute.xlu0 %302
    %305 = vset.pattern.permute.xlu0 2
    %306 = vperm.xlu0 %305, %v276
    %v307 = vpop.permute.xlu0 %306
    %309 = vset.pattern.permute.xlu0 2
    %310 = vperm.xlu0 %309, %v280
    %v311 = vpop.permute.xlu0 %310
    %313 = vset.pattern.permute.xlu0 2
    %314 = vperm.xlu0 %313, %v284
    %v315 = vpop.permute.xlu0 %314
    %317 = vset.pattern.permute.xlu0 2
    %318 = vperm.xlu0 %317, %v288
    %v319 = vpop.permute.xlu0 %318
    %321 = vset.pattern.permute.xlu0 2
    %322 = vperm.xlu0 %321, %v292
    %v323 = vpop.permute.xlu0 %322
    %325 = vset.pattern.permute.xlu0 2
    %326 = vperm.xlu0 %325, %v296
    %v327 = vpop.permute.xlu0 %326
    %v329 = vadd.f32 %v208, %v299
    %v330 = vadd.f32 %v209, %v303
    %v331 = vadd.f32 %v210, %v307
    %v332 = vadd.f32 %v211, %v311
    %v333 = vadd.f32 %v212, %v315
    %v334 = vadd.f32 %v213, %v319
    %v335 = vadd.f32 %v214, %v323
    %v336 = vadd.f32 %v215, %v327
    %vm337 = vcmask 128000
    %338 = vst.msk [vmem:[%s2] sm:$0x3f] %vm337, %v329
    %339 = vst.msk [vmem:[%s2 + $0x8] sm:$0x3f] %vm337, %v330
    %340 = vst.msk [vmem:[%s2 + $0x10] sm:$0x3f] %vm337, %v331
    %341 = vst.msk [vmem:[%s2 + $0x18] sm:$0x3f] %vm337, %v332
    %342 = vst.msk [vmem:[%s2 + $0x20] sm:$0x3f] %vm337, %v333
    %343 = vst.msk [vmem:[%s2 + $0x28] sm:$0x3f] %vm337, %v334
    %344 = vst.msk [vmem:[%s2 + $0x30] sm:$0x3f] %vm337, %v335
    %345 = vst.msk [vmem:[%s2 + $0x38] sm:$0x3f] %vm337, %v336
    // Predicated region
    $region18: #{tpu_custom_call.1} parent=1 // pred_check
      _
    $region19: #{tpu_custom_call.1} parent=1 // pred_check_branch
      %347 = sbr.rel (0) target = $region21
    $region20: #{tpu_custom_call.1} parent=1 // pred_region
      _
    $region21: #{tpu_custom_call.1} parent=1 // pred_fallthru
      _
    // Predicated region
    $region22: #{tpu_custom_call.1} parent=1 // pred_check
      _
    $region23: #{tpu_custom_call.1} parent=1 // pred_check_branch
      %349 = sbr.rel (0) target = $region25
    $region24: #{tpu_custom_call.1} parent=1 // pred_region
      _
    $region25: #{tpu_custom_call.1} parent=1 // pred_fallthru
      _
    %350 = vsyncpa [#allocation3], 1
    %351 = vsyncpa [#allocation5], 1

</llo_original>
